<compile_context>
chip_gen: v7x
topology: tpu7x:2x2x1
jax: 0.10.0
libtpu: 0.0.40
codegen_flags: <defaults>
</compile_context>

<pallas_src>
import functools

import jax
import jax.numpy as jnp
from jax.experimental import pallas as pl
from jax.experimental.pallas import tpu as pltpu

STATE_DIM = 4
HIDDEN_UNITS = 64
ACTION_DIM = 8

DEFAULT_TILE_B = 32768  # lane-dense batch tile; sweep 16384-65536 (fits v7x VMEM easily)


def _round_up(n: int, m: int) -> int:
    return ((n + m - 1) // m) * m


def qnetwork_kernel(xT_ref, w1_ref, b1_ref, w2_ref, b2_ref, oT_ref):
    # Lane-dense transposed formulation: batch on the 128-lane axis.
    # fc1: hT = relu(W1 @ xT + b1) : (HIDDEN_UNITS, TILE_B)
    hT = jnp.dot(w1_ref[...], xT_ref[...], preferred_element_type=jnp.float32)
    hT = jnp.maximum(hT + b1_ref[...], 0.0)
    # fc2: outT = W2 @ hT + b2 : (ACTION_DIM, TILE_B); unmasked full-lane stores.
    oT = jnp.dot(w2_ref[...], hT, preferred_element_type=jnp.float32)
    oT_ref[...] = (oT + b2_ref[...]).astype(oT_ref.dtype)


@functools.partial(jax.jit, static_argnames=("tile_b",))
def qnetwork_forward(x, w1, b1, w2, b2, *, tile_b: int = DEFAULT_TILE_B):
    """Forward pass.

    x:  (B, STATE_DIM) f32.
    w1: (HIDDEN_UNITS, STATE_DIM), b1: (HIDDEN_UNITS, 1)   -- PyTorch (out, in) layout.
    w2: (ACTION_DIM, HIDDEN_UNITS), b2: (ACTION_DIM, 1)
    Returns (B, ACTION_DIM) f32.
    """
    B = x.shape[0]
    xT = x.T  # (STATE_DIM, B): features-major so batch lands on the lane axis.

    if B <= 128:
        # Single full-extent block (block last dim == full array dim is allowed).
        tile = B
    else:
        # Lane granularity 128; cap so the grid has >= 2 steps (v7x: both TCs busy).
        tile = min(tile_b, max(128, _round_up(pl.cdiv(B, 2), 128)))
        tile = _round_up(tile, 128)

    grid = (pl.cdiv(B, tile),)  # no jnp.pad: boundary block is masked by Pallas

    outT = pl.pallas_call(
        qnetwork_kernel,
        out_shape=jax.ShapeDtypeStruct((ACTION_DIM, B), jnp.float32),
        grid=grid,
        in_specs=[
            # Batch-tiled activation stream (lane-dense).
            pl.BlockSpec((STATE_DIM, tile), lambda i: (0, i)),
            # Weights/biases: constant index_map -> fetched once, VMEM-resident.
            pl.BlockSpec((HIDDEN_UNITS, STATE_DIM), lambda i: (0, 0)),
            pl.BlockSpec((HIDDEN_UNITS, 1), lambda i: (0, 0)),
            pl.BlockSpec((ACTION_DIM, HIDDEN_UNITS), lambda i: (0, 0)),
            pl.BlockSpec((ACTION_DIM, 1), lambda i: (0, 0)),
        ],
        out_specs=pl.BlockSpec((ACTION_DIM, tile), lambda i: (0, i)),
        compiler_params=pltpu.CompilerParams(
            dimension_semantics=("parallel",),   # shard batch axis across TCs (v7x)
            vmem_limit_bytes=48 * 1024 * 1024,   # headroom for tile sweeps; < v7x 64 MiB
        ),
    )(xT, w1, b1, w2, b2)
    return outT.T


def init_params(key):
    """Deterministic init mimicking PyTorch Linear default (uniform +-1/sqrt(fan_in)).

    Weights kept in PyTorch's (out, in) layout; biases kept 2D (out, 1) for TPU layout.
    """
    k1, k2, k3, k4 = jax.random.split(key, 4)
    lim1 = 1.0 / (STATE_DIM ** 0.5)
    lim2 = 1.0 / (HIDDEN_UNITS ** 0.5)
    w1 = jax.random.uniform(k1, (HIDDEN_UNITS, STATE_DIM), jnp.float32, -lim1, lim1)
    b1 = jax.random.uniform(k2, (HIDDEN_UNITS, 1), jnp.float32, -lim1, lim1)
    w2 = jax.random.uniform(k3, (ACTION_DIM, HIDDEN_UNITS), jnp.float32, -lim2, lim2)
    b2 = jax.random.uniform(k4, (ACTION_DIM, 1), jnp.float32, -lim2, lim2)
    return w1, b1, w2, b2


def reference_forward(x, w1, b1, w2, b2):
    h = jnp.maximum(x @ w1.T + b1[:, 0], 0.0)
    return h @ w2.T + b2[:, 0]


if __name__ == "__main__":
    key = jax.random.PRNGKey(0)
    kp, kx1, kx2 = jax.random.split(key, 3)
    params = init_params(kp)

    # Case 1: small batch (single full-extent block).
    B1 = 8
    x1 = jax.random.normal(kx1, (B1, STATE_DIM), jnp.float32)
    out1 = jax.block_until_ready(qnetwork_forward(x1, *params))
    ref1 = reference_forward(x1, *params)
    assert out1.shape == (B1, ACTION_DIM)
    assert jnp.allclose(out1, ref1, atol=1e-5, rtol=1e-5)

    # Case 2: ragged batch (not a multiple of 128) -> 2-step grid, boundary-block masking.
    B2 = 200
    x2 = jax.random.normal(kx2, (B2, STATE_DIM), jnp.float32)
    out2 = jax.block_until_ready(qnetwork_forward(x2, *params))
    ref2 = reference_forward(x2, *params)
    assert out2.shape == (B2, ACTION_DIM)
    assert jnp.allclose(out2, ref2, atol=1e-5, rtol=1e-5)

    print("KERNEL_OK")
</pallas_src>

<mosaic_0001>
module attributes {stable_mosaic.version = 11 : i64} {
  func.func @qnetwork_kernel(%arg0: i32, %arg1: memref<4x8xf32, #tpu.memory_space<vmem>>, %arg2: memref<64x4xf32, #tpu.memory_space<vmem>>, %arg3: memref<64x1xf32, #tpu.memory_space<vmem>>, %arg4: memref<8x64xf32, #tpu.memory_space<vmem>>, %arg5: memref<8x1xf32, #tpu.memory_space<vmem>>, %arg6: memref<8x8xf32, #tpu.memory_space<vmem>>) attributes {dimension_semantics = [#tpu.dimension_semantics<parallel>], iteration_bounds = array<i64: 1>, scalar_prefetch = 0 : i64, scratch_operands = 0 : i64, tpu.core_type = #tpu.core_type<tc>, window_params = [{transform_indices = @transform_0, window_bounds = array<i64: 4, 8>}, {pipeline_mode = #tpu.pipeline_mode<synchronous>, transform_indices = @transform_1, window_bounds = array<i64: 64, 4>}, {pipeline_mode = #tpu.pipeline_mode<synchronous>, transform_indices = @transform_2, window_bounds = array<i64: 64, 1>}, {pipeline_mode = #tpu.pipeline_mode<synchronous>, transform_indices = @transform_3, window_bounds = array<i64: 8, 64>}, {pipeline_mode = #tpu.pipeline_mode<synchronous>, transform_indices = @transform_4, window_bounds = array<i64: 8, 1>}, {transform_indices = @transform_5, window_bounds = array<i64: 8, 8>}]} {
    %c0 = arith.constant 0 : index
    %c0_0 = arith.constant 0 : index
    %0 = vector.load %arg2[%c0, %c0_0] : memref<64x4xf32, #tpu.memory_space<vmem>>, vector<64x4xf32>
    %c0_1 = arith.constant 0 : index
    %c0_2 = arith.constant 0 : index
    %1 = vector.load %arg1[%c0_1, %c0_2] : memref<4x8xf32, #tpu.memory_space<vmem>>, vector<4x8xf32>
    %cst = arith.constant dense<0.000000e+00> : vector<64x8xf32>
    %2 = tpu.matmul %0, %1, %cst {dimension_numbers = #tpu.dot_dimension_numbers<[1], [0], [0], [1], [0, 0, 1, 1], [], []>} : vector<64x4xf32>, vector<4x8xf32>, vector<64x8xf32> -> vector<64x8xf32>
    %c0_3 = arith.constant 0 : index
    %c0_4 = arith.constant 0 : index
    %3 = vector.load %arg3[%c0_3, %c0_4] : memref<64x1xf32, #tpu.memory_space<vmem>>, vector<64x1xf32>
    %4 = vector.broadcast %3 : vector<64x1xf32> to vector<64x8xf32>
    %5 = arith.addf %2, %4 : vector<64x8xf32>
    %cst_5 = arith.constant 0.000000e+00 : f32
    %6 = vector.broadcast %cst_5 : f32 to vector<64x8xf32>
    %7 = arith.maximumf %5, %6 : vector<64x8xf32>
    %c0_6 = arith.constant 0 : index
    %c0_7 = arith.constant 0 : index
    %8 = vector.load %arg4[%c0_6, %c0_7] : memref<8x64xf32, #tpu.memory_space<vmem>>, vector<8x64xf32>
    %cst_8 = arith.constant dense<0.000000e+00> : vector<8x8xf32>
    %9 = tpu.matmul %8, %7, %cst_8 {dimension_numbers = #tpu.dot_dimension_numbers<[1], [0], [0], [1], [0, 0, 1, 1], [], []>} : vector<8x64xf32>, vector<64x8xf32>, vector<8x8xf32> -> vector<8x8xf32>
    %c0_9 = arith.constant 0 : index
    %c0_10 = arith.constant 0 : index
    %10 = vector.load %arg5[%c0_9, %c0_10] : memref<8x1xf32, #tpu.memory_space<vmem>>, vector<8x1xf32>
    %11 = vector.broadcast %10 : vector<8x1xf32> to vector<8x8xf32>
    %12 = arith.addf %9, %11 : vector<8x8xf32>
    %c0_11 = arith.constant 0 : index
    %c0_12 = arith.constant 0 : index
    %13 = vector.load %arg6[%c0_11, %c0_12] : memref<8x8xf32, #tpu.memory_space<vmem>>, vector<8x8xf32>
    tpu.vector_store %arg6[%c0_11, %c0_12], %12 {strides = array<i32>} : memref<8x8xf32, #tpu.memory_space<vmem>>, vector<8x8xf32>,
    return
  }
  func.func @transform_0(%arg0: i32) -> (i32, i32) {
    %c0_i32 = arith.constant 0 : i32
    %c0_i32_0 = arith.constant 0 : i32
    return %c0_i32, %arg0 : i32, i32
  }
  func.func @transform_1(%arg0: i32) -> (i32, i32) {
    %c0_i32 = arith.constant 0 : i32
    %c0_i32_0 = arith.constant 0 : i32
    %c0_i32_1 = arith.constant 0 : i32
    return %c0_i32, %c0_i32_0 : i32, i32
  }
  func.func @transform_2(%arg0: i32) -> (i32, i32) {
    %c0_i32 = arith.constant 0 : i32
    %c0_i32_0 = arith.constant 0 : i32
    %c0_i32_1 = arith.constant 0 : i32
    return %c0_i32, %c0_i32_0 : i32, i32
  }
  func.func @transform_3(%arg0: i32) -> (i32, i32) {
    %c0_i32 = arith.constant 0 : i32
    %c0_i32_0 = arith.constant 0 : i32
    %c0_i32_1 = arith.constant 0 : i32
    return %c0_i32, %c0_i32_0 : i32, i32
  }
  func.func @transform_4(%arg0: i32) -> (i32, i32) {
    %c0_i32 = arith.constant 0 : i32
    %c0_i32_0 = arith.constant 0 : i32
    %c0_i32_1 = arith.constant 0 : i32
    return %c0_i32, %c0_i32_0 : i32, i32
  }
  func.func @transform_5(%arg0: i32) -> (i32, i32) {
    %c0_i32 = arith.constant 0 : i32
    %c0_i32_0 = arith.constant 0 : i32
    return %c0_i32, %arg0 : i32, i32
  }
}

</mosaic_0001>

<llo_original>
// kernel: qnetwork_forward.1
$region0: #{qnetwork_forward.1}
  #allocation0 [shape = 'u32[]', space=smem, size = 0x4, offset = 0x4, fixed_abs, tag = 'smem constant byte address 0x4 - core index']
  #allocation1 [shape = 'u32[144,128]{1,0:T(1,128)}', space=vmem, size = 0x12000, scoped, tag = 'internal scratch']
  %s0 = inlined_call_operand.vmem [shape: f32[4,8], index: 0, kind: input, shape index: {}]
  %s1 = inlined_call_operand.vmem [shape: f32[64,4], index: 1, kind: input, shape index: {}]
  %s2 = inlined_call_operand.vmem [shape: f32[64,1], index: 2, kind: input, shape index: {}]
  %s3 = inlined_call_operand.vmem [shape: f32[8,64], index: 3, kind: input, shape index: {}]
  %s4 = inlined_call_operand.vmem [shape: f32[8,1], index: 4, kind: input, shape index: {}]
  %s5 = inlined_call_operand.vmem [shape: f32[8,8], index: 5, kind: output, shape index: {}]
  %s6 = sld [smem:[#allocation0]]
  $region30: #{qnetwork_forward.1} parent=0
    _
  %s8 = ssub.s32 1, %s6
  %s9 = scalar_select 0, %s8, %s6
  // Predicated region
  $region2: #{qnetwork_forward.1} parent=0 // pred_check
    _
  $region3: #{qnetwork_forward.1} parent=0 // pred_check_branch
    %11 = sbr.rel (0) target = $region5
  $region4: #{qnetwork_forward.1} parent=0 // pred_region
    _
  $region5: #{qnetwork_forward.1} parent=0 // pred_fallthru
    _
  // Predicated region
  $region6: #{qnetwork_forward.1} parent=0 // pred_check
    _
  $region7: #{qnetwork_forward.1} parent=0 // pred_check_branch
    %13 = sbr.rel (0) target = $region9
  $region8: #{qnetwork_forward.1} parent=0 // pred_region
    _
  $region9: #{qnetwork_forward.1} parent=0 // pred_fallthru
    _
  // Predicated region
  $region10: #{qnetwork_forward.1} parent=0 // pred_check
    _
  $region11: #{qnetwork_forward.1} parent=0 // pred_check_branch
    %15 = sbr.rel (0) target = $region13
  $region12: #{qnetwork_forward.1} parent=0 // pred_region
    _
  $region13: #{qnetwork_forward.1} parent=0 // pred_fallthru
    _
  // Predicated region
  $region14: #{qnetwork_forward.1} parent=0 // pred_check
    _
  $region15: #{qnetwork_forward.1} parent=0 // pred_check_branch
    %17 = sbr.rel (0) target = $region17
  $region16: #{qnetwork_forward.1} parent=0 // pred_region
    _
  $region17: #{qnetwork_forward.1} parent=0 // pred_fallthru
    _
  // Predicated region
  $region18: #{qnetwork_forward.1} parent=0 // pred_check
    _
  $region19: #{qnetwork_forward.1} parent=0 // pred_check_branch
    %19 = sbr.rel (0) target = $region21
  $region20: #{qnetwork_forward.1} parent=0 // pred_region
    _
  $region21: #{qnetwork_forward.1} parent=0 // pred_fallthru
    _
  %v20 = vld [vmem:[%s1] sm:$0xff]
  %v21 = vld [vmem:[%s1 + $0x8] sm:$0xff]
  %v22 = vld [vmem:[%s1 + $0x10] sm:$0xff]
  %v23 = vld [vmem:[%s1 + $0x18] sm:$0xff]
  %v24 = vld [vmem:[%s1 + $0x20] sm:$0xff]
  %v25 = vld [vmem:[%s1 + $0x28] sm:$0xff]
  %v26 = vld [vmem:[%s1 + $0x30] sm:$0xff]
  %v27 = vld [vmem:[%s1 + $0x38] sm:$0xff]
  %v28 = vld [vmem:[%s0] sm:$0xf]
  %v29 = vld [vmem:[%s2] sm:$0xff]
  %v30 = vld [vmem:[%s2 + $0x8] sm:$0xff]
  %v31 = vld [vmem:[%s2 + $0x10] sm:$0xff]
  %v32 = vld [vmem:[%s2 + $0x18] sm:$0xff]
  %v33 = vld [vmem:[%s2 + $0x20] sm:$0xff]
  %v34 = vld [vmem:[%s2 + $0x28] sm:$0xff]
  %v35 = vld [vmem:[%s2 + $0x30] sm:$0xff]
  %v36 = vld [vmem:[%s2 + $0x38] sm:$0xff]
  %38 = vset.pattern.permute.xlu0 0
  %39 = vperm.xlu0 %38, %v29
  %v40 = vpop.permute.xlu0 %39
  %43 = vset.pattern.permute.xlu0 0
  %44 = vperm.xlu0 %43, %v30
  %v45 = vpop.permute.xlu0 %44
  %48 = vset.pattern.permute.xlu0 0
  %49 = vperm.xlu0 %48, %v31
  %v50 = vpop.permute.xlu0 %49
  %53 = vset.pattern.permute.xlu0 0
  %54 = vperm.xlu0 %53, %v32
  %v55 = vpop.permute.xlu0 %54
  %58 = vset.pattern.permute.xlu0 0
  %59 = vperm.xlu0 %58, %v33
  %v60 = vpop.permute.xlu0 %59
  %63 = vset.pattern.permute.xlu0 0
  %64 = vperm.xlu0 %63, %v34
  %v65 = vpop.permute.xlu0 %64
  %68 = vset.pattern.permute.xlu0 0
  %69 = vperm.xlu0 %68, %v35
  %v70 = vpop.permute.xlu0 %69
  %73 = vset.pattern.permute.xlu0 0
  %74 = vperm.xlu0 %73, %v36
  %v75 = vpop.permute.xlu0 %74
  %vm77 = vcmask 31744
  %v79 = vsel %vm77, %v20, 0
  %v82 = vsel %vm77, %v21, 0
  %v85 = vsel %vm77, %v22, 0
  %v88 = vsel %vm77, %v23, 0
  %v91 = vsel %vm77, %v24, 0
  %v94 = vsel %vm77, %v25, 0
  %v97 = vsel %vm77, %v26, 0
  %v100 = vsel %vm77, %v27, 0
  %vm102 = vcmask 1043456
  %v104 = vsel %vm102, %v28, 0
  %106 = vmatprep.subr.mxu0 0.0
  %107 = vmatpush1.msra.mxu0 %v104
  %108 = vmatprep.subr.mxu0 0.0
  %109 = vmatpush1.msra.mxu0 0.0
  %110 = vmatprep.subr.mxu0 0.0
  %111 = vmatpush1.msra.mxu0 0.0
  %112 = vmatprep.subr.mxu0 0.0
  %113 = vmatpush1.msra.mxu0 0.0
  %114 = vmatprep.subr.mxu0 0.0
  %115 = vmatpush1.msra.mxu0 0.0
  %116 = vmatprep.subr.mxu0 0.0
  %117 = vmatpush1.msra.mxu0 0.0
  %118 = vmatprep.subr.mxu0 0.0
  %119 = vmatpush1.msra.mxu0 0.0
  %120 = vmatprep.subr.mxu0 0.0
  %121 = vmatpush1.msra.mxu0 0.0
  %122 = vmatprep.subr.mxu0 0.0
  %123 = vmatpush1.msra.mxu0 0.0
  %124 = vmatprep.subr.mxu0 0.0
  %125 = vmatpush1.msra.mxu0 0.0
  %126 = vmatprep.subr.mxu0 0.0
  %127 = vmatpush1.msra.mxu0 0.0
  %128 = vmatprep.subr.mxu0 0.0
  %129 = vmatpush1.msra.mxu0 0.0
  %130 = vmatprep.subr.mxu0 0.0
  %131 = vmatpush1.msra.mxu0 0.0
  %132 = vmatprep.subr.mxu0 0.0
  %133 = vmatpush1.msra.mxu0 0.0
  %134 = vmatprep.subr.mxu0 0.0
  %135 = vmatpush1.msra.mxu0 0.0
  %136 = vmatprep.subr.mxu0 0.0
  %137 = vmatpush1.msra.mxu0 0.0
  %138 = vmatprep.subr.mxu0 0.0
  %139 = vmatpush1.msra.mxu0 0.0
  %140 = vmatprep.subr.mxu0 0.0
  %141 = vmatpush1.msra.mxu0 0.0
  %142 = vmatprep.subr.mxu0 0.0
  %143 = vmatpush1.msra.mxu0 0.0
  %144 = vmatprep.subr.mxu0 0.0
  %145 = vmatpush1.msra.mxu0 0.0
  %146 = vmatprep.subr.mxu0 0.0
  %147 = vmatpush1.msra.mxu0 0.0
  %148 = vmatprep.subr.mxu0 0.0
  %149 = vmatpush1.msra.mxu0 0.0
  %150 = vmatprep.subr.mxu0 0.0
  %151 = vmatpush1.msra.mxu0 0.0
  %152 = vmatprep.subr.mxu0 0.0
  %153 = vmatpush1.msra.mxu0 0.0
  %154 = vmatprep.subr.mxu0 0.0
  %155 = vmatpush1.msra.mxu0 0.0
  %156 = vmatprep.subr.mxu0 0.0
  %157 = vmatpush1.msra.mxu0 0.0
  %158 = vmatprep.subr.mxu0 0.0
  %159 = vmatpush1.msra.mxu0 0.0
  %160 = vmatprep.subr.mxu0 0.0
  %161 = vmatpush1.msra.mxu0 0.0
  %162 = vmatprep.subr.mxu0 0.0
  %163 = vmatpush1.msra.mxu0 0.0
  %164 = vmatprep.subr.mxu0 0.0
  %165 = vmatpush1.msra.mxu0 0.0
  %166 = vmatprep.subr.mxu0 0.0
  %167 = vmatpush1.msra.mxu0 0.0
  %168 = vmatprep.subr.mxu0 0.0
  %169 = vmatpush1.msra.mxu0 0.0
  %170 = vmatprep.mubr.f32.mxu0 0.0
  %171 = vmatmul.mubr.f32.gmra.mrb[0].mxu0 %v79
  %v172 = vpop.f32.mrb[0].mxu0
  %v173 = vadd.f32 %v40, %v172
  %v174 = vpop.f32.mrb[0].mxu0
  %175 = vmatprep.mubr.f32.mxu0 0.0
  %176 = vmatmul.mubr.f32.gmra.mrb[0].mxu0 %v82
  %v177 = vpop.f32.mrb[0].mxu0
  %v178 = vadd.f32 %v45, %v177
  %v179 = vpop.f32.mrb[0].mxu0
  %180 = vmatprep.mubr.f32.mxu0 0.0
  %181 = vmatmul.mubr.f32.gmra.mrb[0].mxu0 %v85
  %v182 = vpop.f32.mrb[0].mxu0
  %v183 = vadd.f32 %v50, %v182
  %v184 = vpop.f32.mrb[0].mxu0
  %185 = vmatprep.mubr.f32.mxu0 0.0
  %186 = vmatmul.mubr.f32.gmra.mrb[0].mxu0 %v88
  %v187 = vpop.f32.mrb[0].mxu0
  %v188 = vadd.f32 %v55, %v187
  %v189 = vpop.f32.mrb[0].mxu0
  %190 = vmatprep.mubr.f32.mxu0 0.0
  %191 = vmatmul.mubr.f32.gmra.mrb[0].mxu0 %v91
  %v192 = vpop.f32.mrb[0].mxu0
  %v193 = vadd.f32 %v60, %v192
  %v194 = vpop.f32.mrb[0].mxu0
  %195 = vmatprep.mubr.f32.mxu0 0.0
  %196 = vmatmul.mubr.f32.gmra.mrb[0].mxu0 %v94
  %v197 = vpop.f32.mrb[0].mxu0
  %v198 = vadd.f32 %v65, %v197
  %v199 = vpop.f32.mrb[0].mxu0
  %200 = vmatprep.mubr.f32.mxu0 0.0
  %201 = vmatmul.mubr.f32.gmra.mrb[0].mxu0 %v97
  %v202 = vpop.f32.mrb[0].mxu0
  %v203 = vadd.f32 %v70, %v202
  %v204 = vpop.f32.mrb[0].mxu0
  %205 = vmatprep.mubr.f32.mxu0 0.0
  %206 = vmatmul.mubr.f32.gmra.mrb[0].mxu0 %v100
  %v207 = vpop.f32.mrb[0].mxu0
  %v208 = vadd.f32 %v75, %v207
  %v209 = vpop.f32.mrb[0].mxu0
  %210 = vdwg.mxu0
  %v211 = vmax.f32 %v173, 0.0
  %v212 = vmax.f32 %v178, 0.0
  %v213 = vmax.f32 %v183, 0.0
  %v214 = vmax.f32 %v188, 0.0
  %v215 = vmax.f32 %v193, 0.0
  %v216 = vmax.f32 %v198, 0.0
  %v217 = vmax.f32 %v203, 0.0
  %v218 = vmax.f32 %v208, 0.0
  %v219 = vld [vmem:[%s3] sm:$0xff]
  %v220 = vld [vmem:[%s4] sm:$0xff]
  %222 = vset.pattern.permute.xlu0 0
  %223 = vperm.xlu0 %222, %v220
  %v224 = vpop.permute.xlu0 %223
  %vm226 = vcmask 523264
  %v228 = vsel %vm226, %v219, 0
  %230 = vmatprep.subr.mxu0 0.0
  %231 = vmatpush1.msra.mxu0 %v211
  %232 = vmatprep.subr.mxu0 0.0
  %233 = vmatpush1.msra.mxu0 %v212
  %234 = vmatprep.subr.mxu0 0.0
  %235 = vmatpush1.msra.mxu0 %v213
  %236 = vmatprep.subr.mxu0 0.0
  %237 = vmatpush1.msra.mxu0 %v214
  %238 = vmatprep.subr.mxu0 0.0
  %239 = vmatpush1.msra.mxu0 %v215
  %240 = vmatprep.subr.mxu0 0.0
  %241 = vmatpush1.msra.mxu0 %v216
  %242 = vmatprep.subr.mxu0 0.0
  %243 = vmatpush1.msra.mxu0 %v217
  %244 = vmatprep.subr.mxu0 0.0
  %245 = vmatpush1.msra.mxu0 %v218
  %246 = vmatprep.subr.mxu0 0.0
  %247 = vmatpush1.msra.mxu0 0.0
  %248 = vmatprep.subr.mxu0 0.0
  %249 = vmatpush1.msra.mxu0 0.0
  %250 = vmatprep.subr.mxu0 0.0
  %251 = vmatpush1.msra.mxu0 0.0
  %252 = vmatprep.subr.mxu0 0.0
  %253 = vmatpush1.msra.mxu0 0.0
  %254 = vmatprep.subr.mxu0 0.0
  %255 = vmatpush1.msra.mxu0 0.0
  %256 = vmatprep.subr.mxu0 0.0
  %257 = vmatpush1.msra.mxu0 0.0
  %258 = vmatprep.subr.mxu0 0.0
  %259 = vmatpush1.msra.mxu0 0.0
  %260 = vmatprep.subr.mxu0 0.0
  %261 = vmatpush1.msra.mxu0 0.0
  %262 = vmatprep.subr.mxu0 0.0
  %263 = vmatpush1.msra.mxu0 0.0
  %264 = vmatprep.subr.mxu0 0.0
  %265 = vmatpush1.msra.mxu0 0.0
  %266 = vmatprep.subr.mxu0 0.0
  %267 = vmatpush1.msra.mxu0 0.0
  %268 = vmatprep.subr.mxu0 0.0
  %269 = vmatpush1.msra.mxu0 0.0
  %270 = vmatprep.subr.mxu0 0.0
  %271 = vmatpush1.msra.mxu0 0.0
  %272 = vmatprep.subr.mxu0 0.0
  %273 = vmatpush1.msra.mxu0 0.0
  %274 = vmatprep.subr.mxu0 0.0
  %275 = vmatpush1.msra.mxu0 0.0
  %276 = vmatprep.subr.mxu0 0.0
  %277 = vmatpush1.msra.mxu0 0.0
  %278 = vmatprep.subr.mxu0 0.0
  %279 = vmatpush1.msra.mxu0 0.0
  %280 = vmatprep.subr.mxu0 0.0
  %281 = vmatpush1.msra.mxu0 0.0
  %282 = vmatprep.subr.mxu0 0.0
  %283 = vmatpush1.msra.mxu0 0.0
  %284 = vmatprep.subr.mxu0 0.0
  %285 = vmatpush1.msra.mxu0 0.0
  %286 = vmatprep.subr.mxu0 0.0
  %287 = vmatpush1.msra.mxu0 0.0
  %288 = vmatprep.subr.mxu0 0.0
  %289 = vmatpush1.msra.mxu0 0.0
  %290 = vmatprep.subr.mxu0 0.0
  %291 = vmatpush1.msra.mxu0 0.0
  %292 = vmatprep.subr.mxu0 0.0
  %293 = vmatpush1.msra.mxu0 0.0
  %294 = vmatprep.mubr.f32.mxu0 0.0
  %295 = vmatmul.mubr.f32.gmra.mrb[0].mxu0 %v228
  %v296 = vpop.f32.mrb[0].mxu0
  %v297 = vadd.f32 %v224, %v296
  %v298 = vpop.f32.mrb[0].mxu0
  %299 = vdwg.mxu0
  %vm300 = vcmask 64512
  %301 = vst.msk [vmem:[%s5] sm:$0xff] %vm300, %v297
  // Predicated region
  $region22: #{qnetwork_forward.1} parent=0 // pred_check
    _
  $region23: #{qnetwork_forward.1} parent=0 // pred_check_branch
    %303 = sbr.rel (0) target = $region25
  $region24: #{qnetwork_forward.1} parent=0 // pred_region
    _
  $region25: #{qnetwork_forward.1} parent=0 // pred_fallthru
    _
  // Predicated region
  $region26: #{qnetwork_forward.1} parent=0 // pred_check
    _
  $region27: #{qnetwork_forward.1} parent=0 // pred_check_branch
    %305 = sbr.rel (0) target = $region29
  $region28: #{qnetwork_forward.1} parent=0 // pred_region
    _
  $region29: #{qnetwork_forward.1} parent=0 // pred_fallthru
    _

</llo_original>
